<compile_context>
chip_gen: v5e
topology: v5e:2x2
jax: 0.10.0
libtpu: 0.0.40
codegen_flags: <defaults>
</compile_context>

<pallas_src>
import functools

import jax
import jax.numpy as jnp
from jax.experimental import pallas as pl
from jax.experimental.pallas import tpu as pltpu

CLASSES_COUNT = 5
FEATURES_COUNT = 4
H1 = 32 * FEATURES_COUNT   # 128
H2 = 16 * FEATURES_COUNT   # 64

# Conservative default that fits the 32 MiB scoped-VMEM default on every
# generation (v5e/v6e/v7x). On v5e/v6e (128 MiB physical VMEM) this can be
# raised to 8K-16K together with a larger vmem_limit_bytes.
TILE_B_DEFAULT = 4096


def _round_up(n, m):
    return ((n + m - 1) // m) * m


def mlp_kernel(x_ref, w1_ref, b1_ref, w2_ref, b2_ref, w3_ref, b3_ref, o_ref):
    # x arrives as bf16 (halves the HBM read stream); compute fc1 in f32 on the VPU.
    x = x_ref[...].astype(jnp.float32)                       # (TB, 4)

    # fc1 + ReLU via 4 broadcast-FMAs (K=4 would waste the MXU systolic depth).
    h1 = b1_ref[...]                                          # (1, H1) -> broadcasts
    for k in range(FEATURES_COUNT):                           # unrolled at trace time
        h1 = h1 + x[:, k:k + 1] * w1_ref[k:k + 1, :]
    h1 = jnp.maximum(h1, 0.0)                                 # (TB, H1) f32

    # fc2 + ReLU on the MXU: bf16 inputs, f32 accumulation, f32 bias/ReLU.
    h2 = jnp.dot(h1.astype(jnp.bfloat16), w2_ref[...],
                 preferred_element_type=jnp.float32) + b2_ref[...]
    h2 = jnp.maximum(h2, 0.0)                                 # (TB, H2) f32

    # fc4 logits on the MXU.
    # TODO(synk): H2=64 / 5 classes leave lanes idle; optional zero-pad to 128
    # lanes was skipped (kernel is HBM-stream bound, gain is marginal).
    logits = jnp.dot(h2.astype(jnp.bfloat16), w3_ref[...],
                     preferred_element_type=jnp.float32) + b3_ref[...]

    # log_softmax over the class dim (dim=1), numerically stable, f32.
    m = jnp.max(logits, axis=-1, keepdims=True)
    shifted = logits - m
    lse = jnp.log(jnp.sum(jnp.exp(shifted), axis=-1, keepdims=True))
    o_ref[...] = (shifted - lse).astype(o_ref.dtype)


@functools.partial(jax.jit, static_argnames=("tile_b",))
def net_forward(x, params, *, tile_b=TILE_B_DEFAULT):
    w1, b1, w2, b2, w3, b3 = params
    B = x.shape[0]

    # Tile the batch; small batches get a single (sublane-aligned) tile.
    tb = min(tile_b, _round_up(B, 8))
    num_tiles = pl.cdiv(B, tb)
    b_pad = num_tiles * tb

    x_bf16 = x.astype(jnp.bfloat16)
    if b_pad != B:
        x_bf16 = jnp.pad(x_bf16, ((0, b_pad - B), (0, 0)))

    # Cast the matmul weights once in the wrapper; biases stay f32.
    w2b = w2.astype(jnp.bfloat16)
    w3b = w3.astype(jnp.bfloat16)

    const = lambda i: (0, 0)   # weights/biases: same block every step -> stay resident

    out = pl.pallas_call(
        mlp_kernel,
        out_shape=jax.ShapeDtypeStruct((b_pad, CLASSES_COUNT), jnp.float32),
        grid=(num_tiles,),
        in_specs=[
            pl.BlockSpec((tb, FEATURES_COUNT), lambda i: (i, 0)),   # x (streamed)
            pl.BlockSpec((FEATURES_COUNT, H1), const),              # w1 (f32, VPU path)
            pl.BlockSpec((1, H1), const),                           # b1
            pl.BlockSpec((H1, H2), const),                          # w2 (bf16)
            pl.BlockSpec((1, H2), const),                           # b2
            pl.BlockSpec((H2, CLASSES_COUNT), const),               # w3 (bf16)
            pl.BlockSpec((1, CLASSES_COUNT), const),                # b3
        ],
        out_specs=pl.BlockSpec((tb, CLASSES_COUNT), lambda i: (i, 0)),
        compiler_params=pltpu.CompilerParams(
            dimension_semantics=("parallel",),          # 2 TCs on v7x; no-op on v5e/v6e
            vmem_limit_bytes=32 * 1024 * 1024,
        ),
    )(x_bf16, w1, b1, w2b, b2, w3b, b3)

    return out[:B] if b_pad != B else out


def init_params(key):
    """Deterministic init mimicking torch.nn.Linear default (uniform(-1/sqrt(in), 1/sqrt(in)))."""
    def linear(k, fan_in, fan_out):
        kw, kb = jax.random.split(k)
        bound = 1.0 / jnp.sqrt(jnp.float32(fan_in))
        w = jax.random.uniform(kw, (fan_in, fan_out), jnp.float32, -bound, bound)
        b = jax.random.uniform(kb, (1, fan_out), jnp.float32, -bound, bound)
        return w, b

    k1, k2, k3 = jax.random.split(key, 3)
    w1, b1 = linear(k1, FEATURES_COUNT, H1)
    w2, b2 = linear(k2, H1, H2)
    w3, b3 = linear(k3, H2, CLASSES_COUNT)
    return (w1, b1, w2, b2, w3, b3)


def reference_forward(x, params):
    """Pure-JAX reference mirroring the kernel's mixed bf16/f32 precision."""
    w1, b1, w2, b2, w3, b3 = params
    xb = x.astype(jnp.bfloat16).astype(jnp.float32)
    h1 = jnp.maximum(xb @ w1 + b1, 0.0)
    h2 = jnp.maximum(
        jnp.dot(h1.astype(jnp.bfloat16), w2.astype(jnp.bfloat16),
                preferred_element_type=jnp.float32) + b2, 0.0)
    logits = jnp.dot(h2.astype(jnp.bfloat16), w3.astype(jnp.bfloat16),
                     preferred_element_type=jnp.float32) + b3
    return jax.nn.log_softmax(logits, axis=1)


if __name__ == "__main__":
    key = jax.random.PRNGKey(0)
    kx, kp = jax.random.split(key)
    params = init_params(kp)

    # Small-batch correctness check (single tile).
    batch = 8
    x = jax.random.normal(kx, (batch, FEATURES_COUNT), jnp.float32)
    out = jax.block_until_ready(net_forward(x, params))
    ref = reference_forward(x, params)
    assert out.shape == (batch, CLASSES_COUNT)
    assert jnp.allclose(out, ref, atol=2e-3, rtol=2e-3), "mismatch vs reference (small batch)"
    # log_softmax sanity: rows exponentiate-and-sum to 1.
    assert jnp.allclose(jnp.sum(jnp.exp(out), axis=1), 1.0, atol=1e-4)

    # Multi-tile check (exercises the batch grid, pipelining and tail padding).
    batch2 = 8200   # > 2 * TILE_B_DEFAULT, not a multiple of the tile
    x2 = jax.random.normal(jax.random.PRNGKey(1), (batch2, FEATURES_COUNT), jnp.float32)
    out2 = jax.block_until_ready(net_forward(x2, params))
    ref2 = reference_forward(x2, params)
    assert out2.shape == (batch2, CLASSES_COUNT)
    assert jnp.allclose(out2, ref2, atol=2e-3, rtol=2e-3), "mismatch vs reference (large batch)"

    print("KERNEL_OK")
</pallas_src>

<mosaic_0001>
module attributes {stable_mosaic.version = 11 : i64} {
  func.func @mlp_kernel(%arg0: i32, %arg1: memref<8x4xbf16, #tpu.memory_space<vmem>>, %arg2: memref<4x128xf32, #tpu.memory_space<vmem>>, %arg3: memref<1x128xf32, #tpu.memory_space<vmem>>, %arg4: memref<128x64xbf16, #tpu.memory_space<vmem>>, %arg5: memref<1x64xf32, #tpu.memory_space<vmem>>, %arg6: memref<64x5xbf16, #tpu.memory_space<vmem>>, %arg7: memref<1x5xf32, #tpu.memory_space<vmem>>, %arg8: memref<8x5xf32, #tpu.memory_space<vmem>>) attributes {dimension_semantics = [#tpu.dimension_semantics<parallel>], iteration_bounds = array<i64: 1>, scalar_prefetch = 0 : i64, scratch_operands = 0 : i64, tpu.core_type = #tpu.core_type<tc>, window_params = [{transform_indices = @transform_0, window_bounds = array<i64: 8, 4>}, {pipeline_mode = #tpu.pipeline_mode<synchronous>, transform_indices = @transform_1, window_bounds = array<i64: 4, 128>}, {pipeline_mode = #tpu.pipeline_mode<synchronous>, transform_indices = @transform_2, window_bounds = array<i64: 1, 128>}, {pipeline_mode = #tpu.pipeline_mode<synchronous>, transform_indices = @transform_3, window_bounds = array<i64: 128, 64>}, {pipeline_mode = #tpu.pipeline_mode<synchronous>, transform_indices = @transform_4, window_bounds = array<i64: 1, 64>}, {pipeline_mode = #tpu.pipeline_mode<synchronous>, transform_indices = @transform_5, window_bounds = array<i64: 64, 5>}, {pipeline_mode = #tpu.pipeline_mode<synchronous>, transform_indices = @transform_6, window_bounds = array<i64: 1, 5>}, {transform_indices = @transform_7, window_bounds = array<i64: 8, 5>}]} {
    %c0 = arith.constant 0 : index
    %c0_0 = arith.constant 0 : index
    %0 = vector.load %arg1[%c0, %c0_0] : memref<8x4xbf16, #tpu.memory_space<vmem>>, vector<8x4xbf16>
    %1 = arith.extf %0 : vector<8x4xbf16> to vector<8x4xf32>
    %c0_1 = arith.constant 0 : index
    %c0_2 = arith.constant 0 : index
    %2 = vector.load %arg3[%c0_1, %c0_2] : memref<1x128xf32, #tpu.memory_space<vmem>>, vector<1x128xf32>
    %3 = vector.extract_strided_slice %1 {offsets = [0, 0], sizes = [8, 1], strides = [1, 1]} : vector<8x4xf32> to vector<8x1xf32>
    %c0_3 = arith.constant 0 : index
    %c0_4 = arith.constant 0 : index
    %4 = vector.load %arg2[%c0_3, %c0_4] : memref<4x128xf32, #tpu.memory_space<vmem>>, vector<1x128xf32>
    %5 = vector.broadcast %3 : vector<8x1xf32> to vector<8x128xf32>
    %6 = vector.broadcast %4 : vector<1x128xf32> to vector<8x128xf32>
    %7 = arith.mulf %5, %6 : vector<8x128xf32>
    %8 = vector.broadcast %2 : vector<1x128xf32> to vector<8x128xf32>
    %9 = arith.addf %8, %7 : vector<8x128xf32>
    %10 = vector.extract_strided_slice %1 {offsets = [0, 1], sizes = [8, 1], strides = [1, 1]} : vector<8x4xf32> to vector<8x1xf32>
    %c1 = arith.constant 1 : index
    %c0_5 = arith.constant 0 : index
    %11 = vector.load %arg2[%c1, %c0_5] : memref<4x128xf32, #tpu.memory_space<vmem>>, vector<1x128xf32>
    %12 = vector.broadcast %10 : vector<8x1xf32> to vector<8x128xf32>
    %13 = vector.broadcast %11 : vector<1x128xf32> to vector<8x128xf32>
    %14 = arith.mulf %12, %13 : vector<8x128xf32>
    %15 = arith.addf %9, %14 : vector<8x128xf32>
    %16 = vector.extract_strided_slice %1 {offsets = [0, 2], sizes = [8, 1], strides = [1, 1]} : vector<8x4xf32> to vector<8x1xf32>
    %c2 = arith.constant 2 : index
    %c0_6 = arith.constant 0 : index
    %17 = vector.load %arg2[%c2, %c0_6] : memref<4x128xf32, #tpu.memory_space<vmem>>, vector<1x128xf32>
    %18 = vector.broadcast %16 : vector<8x1xf32> to vector<8x128xf32>
    %19 = vector.broadcast %17 : vector<1x128xf32> to vector<8x128xf32>
    %20 = arith.mulf %18, %19 : vector<8x128xf32>
    %21 = arith.addf %15, %20 : vector<8x128xf32>
    %22 = vector.extract_strided_slice %1 {offsets = [0, 3], sizes = [8, 1], strides = [1, 1]} : vector<8x4xf32> to vector<8x1xf32>
    %c3 = arith.constant 3 : index
    %c0_7 = arith.constant 0 : index
    %23 = vector.load %arg2[%c3, %c0_7] : memref<4x128xf32, #tpu.memory_space<vmem>>, vector<1x128xf32>
    %24 = vector.broadcast %22 : vector<8x1xf32> to vector<8x128xf32>
    %25 = vector.broadcast %23 : vector<1x128xf32> to vector<8x128xf32>
    %26 = arith.mulf %24, %25 : vector<8x128xf32>
    %27 = arith.addf %21, %26 : vector<8x128xf32>
    %cst = arith.constant 0.000000e+00 : f32
    %28 = vector.broadcast %cst : f32 to vector<8x128xf32>
    %29 = arith.maximumf %27, %28 : vector<8x128xf32>
    %30 = arith.truncf %29 : vector<8x128xf32> to vector<8x128xbf16>
    %c0_8 = arith.constant 0 : index
    %c0_9 = arith.constant 0 : index
    %31 = vector.load %arg4[%c0_8, %c0_9] : memref<128x64xbf16, #tpu.memory_space<vmem>>, vector<128x64xbf16>
    %cst_10 = arith.constant dense<0.000000e+00> : vector<8x64xf32>
    %32 = tpu.matmul %30, %31, %cst_10 {dimension_numbers = #tpu.dot_dimension_numbers<[1], [0], [0], [1], [0, 0, 1, 1], [], []>} : vector<8x128xbf16>, vector<128x64xbf16>, vector<8x64xf32> -> vector<8x64xf32>
    %c0_11 = arith.constant 0 : index
    %c0_12 = arith.constant 0 : index
    %33 = vector.load %arg5[%c0_11, %c0_12] : memref<1x64xf32, #tpu.memory_space<vmem>>, vector<1x64xf32>
    %34 = vector.broadcast %33 : vector<1x64xf32> to vector<8x64xf32>
    %35 = arith.addf %32, %34 : vector<8x64xf32>
    %cst_13 = arith.constant 0.000000e+00 : f32
    %36 = vector.broadcast %cst_13 : f32 to vector<8x64xf32>
    %37 = arith.maximumf %35, %36 : vector<8x64xf32>
    %38 = arith.truncf %37 : vector<8x64xf32> to vector<8x64xbf16>
    %c0_14 = arith.constant 0 : index
    %c0_15 = arith.constant 0 : index
    %39 = vector.load %arg6[%c0_14, %c0_15] : memref<64x5xbf16, #tpu.memory_space<vmem>>, vector<64x5xbf16>
    %cst_16 = arith.constant dense<0.000000e+00> : vector<8x5xf32>
    %40 = tpu.matmul %38, %39, %cst_16 {dimension_numbers = #tpu.dot_dimension_numbers<[1], [0], [0], [1], [0, 0, 1, 1], [], []>} : vector<8x64xbf16>, vector<64x5xbf16>, vector<8x5xf32> -> vector<8x5xf32>
    %c0_17 = arith.constant 0 : index
    %c0_18 = arith.constant 0 : index
    %41 = vector.load %arg7[%c0_17, %c0_18] : memref<1x5xf32, #tpu.memory_space<vmem>>, vector<1x5xf32>
    %42 = vector.broadcast %41 : vector<1x5xf32> to vector<8x5xf32>
    %43 = arith.addf %40, %42 : vector<8x5xf32>
    %cst_19 = arith.constant dense<0xFF800000> : vector<8xf32>
    %44 = vector.multi_reduction <maximumf>, %43, %cst_19 [1] : vector<8x5xf32> to vector<8xf32>
    %45 = vector.shape_cast %44 : vector<8xf32> to vector<8x1xf32>
    %46 = vector.broadcast %45 : vector<8x1xf32> to vector<8x5xf32>
    %47 = arith.subf %43, %46 : vector<8x5xf32>
    %48 = math.exp %47 : vector<8x5xf32>
    %cst_20 = arith.constant dense<0.000000e+00> : vector<8xf32>
    %49 = vector.multi_reduction <add>, %48, %cst_20 [1] : vector<8x5xf32> to vector<8xf32>
    %50 = vector.shape_cast %49 : vector<8xf32> to vector<8x1xf32>
    %51 = math.log %50 : vector<8x1xf32>
    %52 = vector.broadcast %51 : vector<8x1xf32> to vector<8x5xf32>
    %53 = arith.subf %47, %52 : vector<8x5xf32>
    %c0_21 = arith.constant 0 : index
    %c0_22 = arith.constant 0 : index
    %54 = vector.load %arg8[%c0_21, %c0_22] : memref<8x5xf32, #tpu.memory_space<vmem>>, vector<8x5xf32>
    tpu.vector_store %arg8[%c0_21, %c0_22], %53 {strides = array<i32>} : memref<8x5xf32, #tpu.memory_space<vmem>>, vector<8x5xf32>,
    return
  }
  func.func @transform_0(%arg0: i32) -> (i32, i32) {
    %c0_i32 = arith.constant 0 : i32
    %c0_i32_0 = arith.constant 0 : i32
    return %arg0, %c0_i32 : i32, i32
  }
  func.func @transform_1(%arg0: i32) -> (i32, i32) {
    %c0_i32 = arith.constant 0 : i32
    %c0_i32_0 = arith.constant 0 : i32
    %c0_i32_1 = arith.constant 0 : i32
    return %c0_i32, %c0_i32_0 : i32, i32
  }
  func.func @transform_2(%arg0: i32) -> (i32, i32) {
    %c0_i32 = arith.constant 0 : i32
    %c0_i32_0 = arith.constant 0 : i32
    %c0_i32_1 = arith.constant 0 : i32
    return %c0_i32, %c0_i32_0 : i32, i32
  }
  func.func @transform_3(%arg0: i32) -> (i32, i32) {
    %c0_i32 = arith.constant 0 : i32
    %c0_i32_0 = arith.constant 0 : i32
    %c0_i32_1 = arith.constant 0 : i32
    return %c0_i32, %c0_i32_0 : i32, i32
  }
  func.func @transform_4(%arg0: i32) -> (i32, i32) {
    %c0_i32 = arith.constant 0 : i32
    %c0_i32_0 = arith.constant 0 : i32
    %c0_i32_1 = arith.constant 0 : i32
    return %c0_i32, %c0_i32_0 : i32, i32
  }
  func.func @transform_5(%arg0: i32) -> (i32, i32) {
    %c0_i32 = arith.constant 0 : i32
    %c0_i32_0 = arith.constant 0 : i32
    %c0_i32_1 = arith.constant 0 : i32
    return %c0_i32, %c0_i32_0 : i32, i32
  }
  func.func @transform_6(%arg0: i32) -> (i32, i32) {
    %c0_i32 = arith.constant 0 : i32
    %c0_i32_0 = arith.constant 0 : i32
    %c0_i32_1 = arith.constant 0 : i32
    return %c0_i32, %c0_i32_0 : i32, i32
  }
  func.func @transform_7(%arg0: i32) -> (i32, i32) {
    %c0_i32 = arith.constant 0 : i32
    %c0_i32_0 = arith.constant 0 : i32
    return %arg0, %c0_i32 : i32, i32
  }
}

</mosaic_0001>

<llo_original>
// kernel: net_forward.1
$region0: #{net_forward.1}
  #allocation0 [shape = 'u32[]', space=smem, size = 0x4, offset = 0x4, fixed_abs, tag = 'smem constant byte address 0x4 - core index']
  #allocation1 [shape = 'u32[72,128]{1,0:T(1,128)}', space=vmem, size = 0x9000, scoped, tag = 'internal scratch']
  %s0 = inlined_call_operand.vmem [shape: bf16[8,4], index: 0, kind: input, shape index: {}]
  %s1 = inlined_call_operand.vmem [shape: f32[4,128], index: 1, kind: input, shape index: {}]
  %s2 = inlined_call_operand.vmem [shape: f32[1,128], index: 2, kind: input, shape index: {}]
  %s3 = inlined_call_operand.vmem [shape: bf16[128,64], index: 3, kind: input, shape index: {}]
  %s4 = inlined_call_operand.vmem [shape: f32[1,64], index: 4, kind: input, shape index: {}]
  %s5 = inlined_call_operand.vmem [shape: bf16[64,5], index: 5, kind: input, shape index: {}]
  %s6 = inlined_call_operand.vmem [shape: f32[1,5], index: 6, kind: input, shape index: {}]
  %s7 = inlined_call_operand.hbm [shape: f32[8,5], index: 7, kind: output, shape index: {}]
  %s8 = sld [smem:[#allocation0]]
  $region38: #{net_forward.1} parent=0
    _
  %s10 = ssub.s32 1, %s8
  %s11 = scalar_select 0, %s10, %s8
  $region1: #{net_forward.1} parent=0
    #allocation2 [shape = 'u8[4096]{0}', space=vmem, size = 0x1000, scoped, tag = 'output window, operand 0, single buffered']
    #allocation3 [shape = 's32[1]{0}', space=sflag, size = 0x4, scoped, tag = 'scoped memory for net_forward.1']
    %12 = vsyncpa [#allocation3], 0
    // Predicated region
    $region2: #{net_forward.1} parent=1 // pred_check
      _
    $region3: #{net_forward.1} parent=1 // pred_check_branch
      %14 = sbr.rel (0) target = $region5
    $region4: #{net_forward.1} parent=1 // pred_region
      _
    $region5: #{net_forward.1} parent=1 // pred_fallthru
      _
    // Predicated region
    $region6: #{net_forward.1} parent=1 // pred_check
      _
    $region7: #{net_forward.1} parent=1 // pred_check_branch
      %16 = sbr.rel (0) target = $region9
    $region8: #{net_forward.1} parent=1 // pred_region
      _
    $region9: #{net_forward.1} parent=1 // pred_fallthru
      _
    // Predicated region
    $region10: #{net_forward.1} parent=1 // pred_check
      _
    $region11: #{net_forward.1} parent=1 // pred_check_branch
      %18 = sbr.rel (0) target = $region13
    $region12: #{net_forward.1} parent=1 // pred_region
      _
    $region13: #{net_forward.1} parent=1 // pred_fallthru
      _
    // Predicated region
    $region14: #{net_forward.1} parent=1 // pred_check
      _
    $region15: #{net_forward.1} parent=1 // pred_check_branch
      %20 = sbr.rel (0) target = $region17
    $region16: #{net_forward.1} parent=1 // pred_region
      _
    $region17: #{net_forward.1} parent=1 // pred_fallthru
      _
    // Predicated region
    $region18: #{net_forward.1} parent=1 // pred_check
      _
    $region19: #{net_forward.1} parent=1 // pred_check_branch
      %22 = sbr.rel (0) target = $region21
    $region20: #{net_forward.1} parent=1 // pred_region
      _
    $region21: #{net_forward.1} parent=1 // pred_fallthru
      _
    // Predicated region
    $region22: #{net_forward.1} parent=1 // pred_check
      _
    $region23: #{net_forward.1} parent=1 // pred_check_branch
      %24 = sbr.rel (0) target = $region25
    $region24: #{net_forward.1} parent=1 // pred_region
      _
    $region25: #{net_forward.1} parent=1 // pred_fallthru
      _
    // Predicated region
    $region26: #{net_forward.1} parent=1 // pred_check
      _
    $region27: #{net_forward.1} parent=1 // pred_check_branch
      %26 = sbr.rel (0) target = $region29
    $region28: #{net_forward.1} parent=1 // pred_region
      _
    $region29: #{net_forward.1} parent=1 // pred_fallthru
      _
    %v28 = vld [vmem:[%s0] sm:$0xf]
    %v29 = vunpack.c.l.bf16 %v28
    %v30 = vld [vmem:[%s2] sm:$0x1]
    %v31 = vld [vmem:[%s1] sm:$0x1]
    %33 = vset.pattern.permute.xlu0 0
    %34 = vperm.xlu0 %33, %v29
    %v35 = vpop.permute.xlu0 %34
    %v37 = vperm.slane %v31, 0
    %v38 = vmul.f32 %v35, %v37
    %v40 = vperm.slane %v30, 0
    %v42 = vadd.f32 %v40, %v38
    %v43 = vld [vmem:[%s1 + $0x1] sm:$0x1]
    %44 = vset.pattern.permute.xlu0 1
    %45 = vperm.xlu0 %44, %v29
    %v46 = vpop.permute.xlu0 %45
    %v48 = vperm.slane %v43, 0
    %v49 = vmul.f32 %v46, %v48
    %v50 = vadd.f32 %v42, %v49
    %v51 = vld [vmem:[%s1 + $0x2] sm:$0x1]
    %52 = vset.pattern.permute.xlu0 2
    %53 = vperm.xlu0 %52, %v29
    %v54 = vpop.permute.xlu0 %53
    %v56 = vperm.slane %v51, 0
    %v57 = vmul.f32 %v54, %v56
    %v58 = vadd.f32 %v50, %v57
    %v59 = vld [vmem:[%s1 + $0x3] sm:$0x1]
    %60 = vset.pattern.permute.xlu0 3
    %61 = vperm.xlu0 %60, %v29
    %v62 = vpop.permute.xlu0 %61
    %v64 = vperm.slane %v59, 0
    %v65 = vmul.f32 %v62, %v64
    %v66 = vadd.f32 %v58, %v65
    %v67 = vmax.f32 %v66, 0.0
    %v68 = vpack.c.bf16 %v67, %v67
    %v69 = vld [vmem:[%s3] sm:$0xf]
    %v70 = vld [vmem:[%s3 + $0x4] sm:$0xf]
    %v71 = vld [vmem:[%s3 + $0x8] sm:$0xf]
    %v72 = vld [vmem:[%s3 + $0xc] sm:$0xf]
    %v73 = vld [vmem:[%s3 + $0x10] sm:$0xf]
    %v74 = vld [vmem:[%s3 + $0x14] sm:$0xf]
    %v75 = vld [vmem:[%s3 + $0x18] sm:$0xf]
    %v76 = vld [vmem:[%s3 + $0x1c] sm:$0xf]
    %v77 = vld [vmem:[%s3 + $0x20] sm:$0xf]
    %v78 = vld [vmem:[%s3 + $0x24] sm:$0xf]
    %v79 = vld [vmem:[%s3 + $0x28] sm:$0xf]
    %v80 = vld [vmem:[%s3 + $0x2c] sm:$0xf]
    %v81 = vld [vmem:[%s3 + $0x30] sm:$0xf]
    %v82 = vld [vmem:[%s3 + $0x34] sm:$0xf]
    %v83 = vld [vmem:[%s3 + $0x38] sm:$0xf]
    %v84 = vld [vmem:[%s3 + $0x3c] sm:$0xf]
    %v85 = vld [vmem:[%s4] sm:$0x1]
    %v87 = vperm.slane %v85, 0
    %v105 = vunpack.c.l.b16 %v69
    %v106 = vunpack.c.l.b16 %v70
    %v107 = vunpack.c.l.b16 %v71
    %v108 = vunpack.c.l.b16 %v72
    %v109 = vunpack.c.l.b16 %v73
    %v110 = vunpack.c.l.b16 %v74
    %v111 = vunpack.c.l.b16 %v75
    %v112 = vunpack.c.l.b16 %v76
    %v113 = vunpack.c.l.b16 %v77
    %v114 = vunpack.c.l.b16 %v78
    %v115 = vunpack.c.l.b16 %v79
    %v116 = vunpack.c.l.b16 %v80
    %v117 = vunpack.c.l.b16 %v81
    %v118 = vunpack.c.l.b16 %v82
    %v119 = vunpack.c.l.b16 %v83
    %v120 = vunpack.c.l.b16 %v84
    %v121 = vpack.c.b16 %v106, %v105
    %v122 = vpack.c.b16 %v108, %v107
    %v123 = vpack.c.b16 %v110, %v109
    %v124 = vpack.c.b16 %v112, %v111
    %v125 = vpack.c.b16 %v114, %v113
    %v126 = vpack.c.b16 %v116, %v115
    %v127 = vpack.c.b16 %v118, %v117
    %v128 = vpack.c.b16 %v120, %v119
    %137 = vmatpush.bf16.msra.mxu0 %v128
    %138 = vmatpush.bf16.msra.mxu0 %v127
    %139 = vmatpush.bf16.msra.mxu0 %v126
    %140 = vmatpush.bf16.msra.mxu0 %v125
    %141 = vmatpush.bf16.msra.mxu0 %v124
    %142 = vmatpush.bf16.msra.mxu0 %v123
    %143 = vmatpush.bf16.msra.mxu0 %v122
    %144 = vmatpush.bf16.msra.mxu0 %v121
    %145 = vmatmul.bf16.gmra.mxu0 %v68
    %v146 = vpop.f32.mrf.mxu0
    %v147 = vadd.f32 %v87, %v146
    %v148 = vpop.f32.mrf.mxu0
    %149 = vdwg.mxu0
    %v150 = vmax.f32 %v147, 0.0
    %v151 = vpack.c.bf16 %v150, %v150
    %v152 = vld [vmem:[%s5] sm:$0xf]
    %v153 = vld [vmem:[%s5 + $0x4] sm:$0xf]
    %v154 = vld [vmem:[%s5 + $0x8] sm:$0xf]
    %v155 = vld [vmem:[%s5 + $0xc] sm:$0xf]
    %v156 = vld [vmem:[%s5 + $0x10] sm:$0xf]
    %v157 = vld [vmem:[%s5 + $0x14] sm:$0xf]
    %v158 = vld [vmem:[%s5 + $0x18] sm:$0xf]
    %v159 = vld [vmem:[%s5 + $0x1c] sm:$0xf]
    %v160 = vld [vmem:[%s6] sm:$0x1]
    %v162 = vperm.slane %v160, 0
    %v172 = vunpack.c.l.b16 %v152
    %v173 = vunpack.c.l.b16 %v153
    %v174 = vunpack.c.l.b16 %v154
    %v175 = vunpack.c.l.b16 %v155
    %v176 = vunpack.c.l.b16 %v156
    %v177 = vunpack.c.l.b16 %v157
    %v178 = vunpack.c.l.b16 %v158
    %v179 = vunpack.c.l.b16 %v159
    %v180 = vpack.c.b16 %v173, %v172
    %v181 = vpack.c.b16 %v175, %v174
    %v182 = vpack.c.b16 %v177, %v176
    %v183 = vpack.c.b16 %v179, %v178
    %vm188 = vcmask 523264
    %v190 = vsel %vm188, %v151, 0
    %192 = vmatpush.bf16.msra.mxu0 0
    %193 = vmatpush.bf16.msra.mxu0 0
    %194 = vmatpush.bf16.msra.mxu0 0
    %195 = vmatpush.bf16.msra.mxu0 0
    %196 = vmatpush.bf16.msra.mxu0 %v183
    %197 = vmatpush.bf16.msra.mxu0 %v182
    %198 = vmatpush.bf16.msra.mxu0 %v181
    %199 = vmatpush.bf16.msra.mxu0 %v180
    %200 = vmatmul.bf16.gmra.mxu0 %v190
    %v201 = vpop.f32.mrf.mxu0
    %v202 = vadd.f32 %v162, %v201
    %v203 = vpop.f32.mrf.mxu0
    %204 = vdwg.mxu0
    %vm205 = vcmask 39936
    %v206 = vsel %vm205, %v202, -inf
    %207 = vmax.xlane.f32.xlu0 %v206
    %v208 = vpop.xlane.xlu0 %207
    %v209 = vsub.f32 %v202, %v208
    %v210 = vmul.f32 %v209, 1.442695
    %v211 = vpow.pop %v210
    %v212 = vsel %vm205, %v211, 0.0
    %213 = vadd.xlane.f32.xlu0 %v212
    %v214 = vpop.xlane.xlu0 %213
    %v215 = vlog2.pop %v214
    %v216 = vmul.f32 %v215, 0.6931472
    %v217 = vsub.f32 %v209, %v216
    %218 = vst.msk [vmem:[#allocation2] sm:$0xff] %vm205, %v217
    // Predicated region
    $region30: #{net_forward.1} parent=1 // pred_check
      _
    $region31: #{net_forward.1} parent=1 // pred_check_branch
      %220 = sbr.rel (0) target = $region33
    $region32: #{net_forward.1} parent=1 // pred_region
      %222 = vsyncadd [#allocation3], 0
      %s224 = sshll.u32 [#allocation2], 4
      %s225 = int_to_ptr.vmem [resolvable:$true] %s224
      %s226 = sshll.u32 %s7, 4
      %s227 = int_to_ptr.hbm [resolvable:$true] %s226
      %229 = dma.vmem_to_hbm [thread:$0]  %s225, 128, %s227, [#allocation3]
    $region33: #{net_forward.1} parent=1 // pred_fallthru
      _
    // Predicated region
    $region34: #{net_forward.1} parent=1 // pred_check
      _
    $region35: #{net_forward.1} parent=1 // pred_check_branch
      %231 = sbr.rel (0) target = $region37
    $region36: #{net_forward.1} parent=1 // pred_region
      %233 = dma.done [#allocation3], 128
    $region37: #{net_forward.1} parent=1 // pred_fallthru
      _
    %234 = vsyncpa [#allocation3], 1

</llo_original>
